<compile_context>
chip_gen: v7x
topology: tpu7x:2x2x1
jax: 0.10.0
libtpu: 0.0.40
codegen_flags: <defaults>
</compile_context>

<pallas_src>
import functools
from typing import NamedTuple, Optional

import jax
import jax.numpy as jnp
from jax.experimental import pallas as pl
from jax.experimental.pallas import tpu as pltpu


def _round_up(x: int, m: int) -> int:
    return (x + m - 1) // m * m


def _sublane_multiple(dtype) -> int:
    """Packed sublane count for a dtype (8 f32, 16 bf16, 32 int8)."""
    return max(8, 32 // max(jnp.dtype(dtype).itemsize, 1))


# ----------------------------------------------------------------------------
# Kernels
# ----------------------------------------------------------------------------
def _lora_linear_kernel(x_ref, wt_ref, b_ref, a_ref, p_ref, o_ref,
                        acc_ref, xa_ref, *, tk):
    """One (tm, tn) output tile; K axis is the innermost reduction loop.

    x@A is recomputed per (i, j) tile (no cross-j carried state), so all grid
    axes except K are order-independent.
    """
    k = pl.program_id(2)
    nk = pl.num_programs(2)

    @pl.when(k == 0)
    def _():
        acc_ref[...] = jnp.zeros_like(acc_ref)
        xa_ref[...] = jnp.zeros_like(xa_ref)

    x = x_ref[...]                                            # (tm, tk)

    # Base matmul: accumulate x_tile @ W^T_tile into the f32 accumulator.
    acc_ref[...] += jnp.dot(x, wt_ref[...], preferred_element_type=jnp.float32)

    # LoRA down-projection: A is fully VMEM-resident; slice the current K tile.
    k0 = pl.multiple_of(k * tk, tk)
    xa_ref[...] += jnp.dot(x, a_ref[pl.ds(k0, tk), :],
                           preferred_element_type=jnp.float32)

    # Finalize: rank-R up-projection + bias, single cast, single store per tile.
    @pl.when(k == nk - 1)
    def _():
        lora = jnp.dot(xa_ref[...].astype(p_ref.dtype), p_ref[...],
                       preferred_element_type=jnp.float32)
        out = acc_ref[...] + lora + b_ref[...].astype(jnp.float32)
        o_ref[...] = out.astype(o_ref.dtype)


def _base_linear_kernel(x_ref, wt_ref, b_ref, o_ref, acc_ref):
    """Plain y = x @ W^T + b (LoRA disabled path: no LoRA operands at all)."""
    k = pl.program_id(2)
    nk = pl.num_programs(2)

    @pl.when(k == 0)
    def _():
        acc_ref[...] = jnp.zeros_like(acc_ref)

    acc_ref[...] += jnp.dot(x_ref[...], wt_ref[...],
                            preferred_element_type=jnp.float32)

    @pl.when(k == nk - 1)
    def _():
        o_ref[...] = (acc_ref[...] + b_ref[...].astype(jnp.float32)).astype(o_ref.dtype)


# ----------------------------------------------------------------------------
# Parameter preparation (ONE-TIME: transpose / pad / cast of static weights)
# ----------------------------------------------------------------------------
class LoRALinearParams(NamedTuple):
    wt: jax.Array                 # (K_pad, N_pad) pre-transposed W, compute dtype
    bias: jax.Array               # (1, N_pad)
    a: Optional[jax.Array]        # (K_pad, R_pad) or None
    p: Optional[jax.Array]        # (R_pad, N_pad) or None
    N: int
    K: int
    N_pad: int
    K_pad: int
    R_pad: int
    tn: int
    tk: int
    compute_dtype: jnp.dtype


def prepare_lora_linear(w, b=None, lora_a=None, lora_b=None, *,
                        compute_dtype=jnp.bfloat16, tn=1024, tk=512):
    """Pre-transpose/pad/cast weights once (do NOT call per forward pass)."""
    N, K = w.shape
    tn = min(tn, _round_up(N, 128))
    tk = min(tk, _round_up(K, 128))
    N_pad = _round_up(N, tn)
    K_pad = _round_up(K, tk)

    wt = jnp.transpose(w).astype(compute_dtype)               # (K, N) MXU-native RHS
    if (K_pad, N_pad) != (K, N):
        wt = jnp.pad(wt, ((0, K_pad - K), (0, N_pad - N)))

    if b is None:
        b = jnp.zeros((N,), dtype=w.dtype)
    bias = b.reshape(1, N)
    if N_pad != N:
        bias = jnp.pad(bias, ((0, 0), (0, N_pad - N)))

    a_p = p_p = None
    R_pad = 0
    if lora_a is not None and lora_b is not None:
        R = lora_a.shape[1]
        R_pad = _round_up(R, _sublane_multiple(compute_dtype))
        a_p = lora_a.astype(compute_dtype)
        p_p = lora_b.astype(compute_dtype)
        if a_p.shape != (K_pad, R_pad):
            a_p = jnp.pad(a_p, ((0, K_pad - K), (0, R_pad - R)))
        if p_p.shape != (R_pad, N_pad):
            p_p = jnp.pad(p_p, ((0, R_pad - R), (0, N_pad - N)))

    return LoRALinearParams(wt=wt, bias=bias, a=a_p, p=p_p, N=N, K=K,
                            N_pad=N_pad, K_pad=K_pad, R_pad=R_pad,
                            tn=tn, tk=tk, compute_dtype=jnp.dtype(compute_dtype))


# ----------------------------------------------------------------------------
# Forward pass
# ----------------------------------------------------------------------------
def lora_linear_apply(x, params: LoRALinearParams, *, enabled=True, tm=512):
    """y = x @ W^T + b  (+ (x @ A) @ B when enabled).  x: (..., K)."""
    orig_shape = x.shape
    K = orig_shape[-1]
    assert K == params.K, "input feature dim mismatch"
    x2d = x.reshape(-1, K)
    M = x2d.shape[0]
    out_dtype = x.dtype

    use_lora = bool(enabled) and (params.a is not None) and (params.p is not None)

    tn, tk = params.tn, params.tk
    N_pad, K_pad, R_pad = params.N_pad, params.K_pad, params.R_pad

    # Clamp tm to the packed sublane multiple of the OUTPUT dtype.
    tm = min(tm, _round_up(M, _sublane_multiple(out_dtype)))
    M_pad = _round_up(M, tm)

    cd = params.compute_dtype
    xc = x2d.astype(cd)
    if (M_pad, K_pad) != (M, K):
        xc = jnp.pad(xc, ((0, M_pad - M), (0, K_pad - K)))

    grid = (M_pad // tm, N_pad // tn, K_pad // tk)
    n_i, n_j, _ = grid

    cd_size = jnp.dtype(cd).itemsize
    b_size = jnp.dtype(params.bias.dtype).itemsize
    out_size = jnp.dtype(out_dtype).itemsize

    # VMEM budget: double-buffered in/out tiles + f32 scratch, with headroom.
    vmem_bytes = (2 * tm * tk * cd_size            # x tiles
                  + 2 * tk * tn * cd_size          # W^T tiles
                  + 2 * 8 * tn * b_size            # bias tiles (sublane padded)
                  + 2 * tm * tn * out_size         # output tiles
                  + tm * tn * 4)                   # f32 accumulator
    if use_lora:
        vmem_bytes += (2 * K_pad * R_pad * cd_size   # resident A (conservative x2)
                       + 2 * R_pad * tn * cd_size    # B tiles
                       + tm * R_pad * 4)             # x@A f32 scratch
    vmem_limit = min(max(int(vmem_bytes * 1.5) + (2 << 20), 32 << 20), 48 << 20)

    # Cost estimate with real re-streaming traffic.
    flops = 2 * M_pad * N_pad * K_pad
    bytes_accessed = (M_pad * K_pad * cd_size * n_j     # x re-read per N tile
                      + K_pad * N_pad * cd_size * n_i   # W re-read per M tile
                      + N_pad * b_size * n_i
                      + M_pad * N_pad * out_size)
    if use_lora:
        flops += 2 * M_pad * K_pad * R_pad * n_j + 2 * M_pad * R_pad * N_pad
        bytes_accessed += (K_pad * R_pad * cd_size            # A resident, read once
                           + R_pad * N_pad * cd_size * n_i)   # B re-read per M tile

    compiler_params = pltpu.CompilerParams(
        dimension_semantics=("parallel", "parallel", "arbitrary"),
        vmem_limit_bytes=vmem_limit,
    )
    cost = pl.CostEstimate(flops=int(flops), transcendentals=0,
                           bytes_accessed=int(bytes_accessed))

    if use_lora:
        out_p = pl.pallas_call(
            functools.partial(_lora_linear_kernel, tk=tk),
            out_shape=jax.ShapeDtypeStruct((M_pad, N_pad), out_dtype),
            grid_spec=pltpu.PrefetchScalarGridSpec(
                num_scalar_prefetch=0,
                grid=grid,
                in_specs=[
                    pl.BlockSpec((tm, tk), lambda i, j, k: (i, k)),        # x
                    pl.BlockSpec((tk, tn), lambda i, j, k: (k, j)),        # W^T
                    pl.BlockSpec((1, tn), lambda i, j, k: (0, j)),         # bias
                    pl.BlockSpec((K_pad, R_pad), lambda i, j, k: (0, 0)),  # A (resident)
                    pl.BlockSpec((R_pad, tn), lambda i, j, k: (0, j)),     # B
                ],
                out_specs=pl.BlockSpec((tm, tn), lambda i, j, k: (i, j)),
                scratch_shapes=[
                    pltpu.VMEM((tm, tn), jnp.float32),       # f32 accumulator
                    pltpu.VMEM((tm, R_pad), jnp.float32),    # x @ A (per (i,j) tile)
                ],
            ),
            compiler_params=compiler_params,
            cost_estimate=cost,
        )(xc, params.wt, params.bias, params.a, params.p)
    else:
        out_p = pl.pallas_call(
            _base_linear_kernel,
            out_shape=jax.ShapeDtypeStruct((M_pad, N_pad), out_dtype),
            grid_spec=pltpu.PrefetchScalarGridSpec(
                num_scalar_prefetch=0,
                grid=grid,
                in_specs=[
                    pl.BlockSpec((tm, tk), lambda i, j, k: (i, k)),        # x
                    pl.BlockSpec((tk, tn), lambda i, j, k: (k, j)),        # W^T
                    pl.BlockSpec((1, tn), lambda i, j, k: (0, j)),         # bias
                ],
                out_specs=pl.BlockSpec((tm, tn), lambda i, j, k: (i, j)),
                scratch_shapes=[pltpu.VMEM((tm, tn), jnp.float32)],
            ),
            compiler_params=compiler_params,
            cost_estimate=cost,
        )(xc, params.wt, params.bias)

    out = out_p
    if (M_pad, N_pad) != (M, params.N):
        out = out_p[:M, :params.N]
    return out.reshape(orig_shape[:-1] + (params.N,))


def lora_linear(x, w, b, lora_a=None, lora_b=None, *, enabled=True,
                compute_dtype=jnp.bfloat16, tm=512, tn=1024, tk=512):
    """One-shot convenience wrapper (prefer prepare_lora_linear + apply for reuse)."""
    params = prepare_lora_linear(w, b, lora_a, lora_b,
                                 compute_dtype=compute_dtype, tn=tn, tk=tk)
    return lora_linear_apply(x, params, enabled=enabled, tm=tm)


# ----------------------------------------------------------------------------
# Self-test
# ----------------------------------------------------------------------------
if __name__ == "__main__":
    # Small shapes consistent with LoRA._from_linear + LoRAOptions(rank=5).
    batch, in_features, out_features, rank = 8, 32, 64, 5

    key = jax.random.PRNGKey(0)
    kx, kw, kb, ka, kp = jax.random.split(key, 5)

    x = jax.random.normal(kx, (batch, in_features), dtype=jnp.float32)
    w = jax.random.normal(kw, (out_features, in_features), dtype=jnp.float32) * 0.1
    b = jax.random.normal(kb, (out_features,), dtype=jnp.float32) * 0.1
    lora_a = jax.random.normal(ka, (in_features, rank), dtype=jnp.float32) * 0.1
    lora_b = jax.random.normal(kp, (rank, out_features), dtype=jnp.float32) * 0.1

    # Weights are prepared once (transpose/pad/cast hoisted out of the forward).
    params = prepare_lora_linear(w, b, lora_a, lora_b, compute_dtype=jnp.float32)

    # Enabled: y = x @ W^T + b + (x @ A) @ B
    y = jax.block_until_ready(lora_linear_apply(x, params, enabled=True))
    y_ref = x @ w.T + b + (x @ lora_a) @ lora_b
    assert y.shape == (batch, out_features)
    assert jnp.allclose(y, y_ref, atol=2e-3, rtol=2e-3), "mismatch (enabled)"

    # Disabled: Python-level branch -> pure base linear kernel, no LoRA operands.
    y_dis = jax.block_until_ready(lora_linear_apply(x, params, enabled=False))
    assert jnp.allclose(y_dis, x @ w.T + b, atol=2e-3, rtol=2e-3), "mismatch (disabled)"

    # Multi-tile grid + bf16 MXU operands: exercises the K-axis accumulator, the
    # per-(i,j) x@A recompute, the resident-A slicing, and the finalize epilogue.
    # grid = (2, 4, 4) at these tile sizes.
    M2, K2, N2, R2 = 64, 512, 512, 5
    kx2, kw2, kb2, ka2, kp2 = jax.random.split(jax.random.PRNGKey(1), 5)
    x2 = jax.random.normal(kx2, (M2, K2), dtype=jnp.float32)
    w2 = jax.random.normal(kw2, (N2, K2), dtype=jnp.float32) * 0.05
    b2 = jax.random.normal(kb2, (N2,), dtype=jnp.float32) * 0.05
    a2 = jax.random.normal(ka2, (K2, R2), dtype=jnp.float32) * 0.05
    p2 = jax.random.normal(kp2, (R2, N2), dtype=jnp.float32) * 0.05

    params2 = prepare_lora_linear(w2, b2, a2, p2, compute_dtype=jnp.bfloat16,
                                  tn=128, tk=128)
    y2 = jax.block_until_ready(lora_linear_apply(x2, params2, enabled=True, tm=32))

    # Reference using the same bf16 operands / f32 accumulation as the kernel.
    bf = jnp.bfloat16
    xa_ref = jnp.dot(x2.astype(bf), a2.astype(bf), preferred_element_type=jnp.float32)
    y2_ref = (jnp.dot(x2.astype(bf), w2.T.astype(bf), preferred_element_type=jnp.float32)
              + jnp.dot(xa_ref.astype(bf), p2.astype(bf),
                        preferred_element_type=jnp.float32)
              + b2)
    assert jnp.allclose(y2, y2_ref.astype(y2.dtype), atol=2e-2, rtol=2e-2), \
        "mismatch (tiled bf16)"

    print("KERNEL_OK")
</pallas_src>

<mosaic_0001>
module attributes {stable_mosaic.version = 11 : i64} {
  func.func @_lora_linear_kernel(%arg0: i32, %arg1: i32, %arg2: i32, %arg3: memref<8x128xf32, #tpu.memory_space<vmem>>, %arg4: memref<128x128xf32, #tpu.memory_space<vmem>>, %arg5: memref<1x128xf32, #tpu.memory_space<vmem>>, %arg6: memref<128x8xf32, #tpu.memory_space<vmem>>, %arg7: memref<8x128xf32, #tpu.memory_space<vmem>>, %arg8: memref<8x128xf32, #tpu.memory_space<vmem>>, %arg9: memref<8x128xf32, #tpu.memory_space<vmem>>, %arg10: memref<8x8xf32, #tpu.memory_space<vmem>>) attributes {dimension_semantics = [#tpu.dimension_semantics<parallel>, #tpu.dimension_semantics<parallel>, #tpu.dimension_semantics<arbitrary>], iteration_bounds = array<i64: 1, 1, 1>, scalar_prefetch = 0 : i64, scratch_operands = 2 : i64, tpu.core_type = #tpu.core_type<tc>, window_params = [{transform_indices = @transform_0, window_bounds = array<i64: 8, 128>}, {transform_indices = @transform_1, window_bounds = array<i64: 128, 128>}, {transform_indices = @transform_2, window_bounds = array<i64: 1, 128>}, {pipeline_mode = #tpu.pipeline_mode<synchronous>, transform_indices = @transform_3, window_bounds = array<i64: 128, 8>}, {transform_indices = @transform_4, window_bounds = array<i64: 8, 128>}, {transform_indices = @transform_5, window_bounds = array<i64: 8, 128>}]} {
    %c0_i32 = arith.constant 0 : i32
    %0 = arith.cmpi eq, %arg2, %c0_i32 : i32
    %1 = arith.extui %0 : i1 to i32
    %c0_i32_0 = arith.constant 0 : i32
    %2 = arith.cmpi ne, %1, %c0_i32_0 : i32
    scf.if %2 {
      %cst_16 = arith.constant 0.000000e+00 : f32
      %20 = vector.broadcast %cst_16 : f32 to vector<8x128xf32>
      %c0_17 = arith.constant 0 : index
      %c0_18 = arith.constant 0 : index
      %21 = vector.load %arg9[%c0_17, %c0_18] : memref<8x128xf32, #tpu.memory_space<vmem>>, vector<8x128xf32>
      tpu.vector_store %arg9[%c0_17, %c0_18], %20 {strides = array<i32>} : memref<8x128xf32, #tpu.memory_space<vmem>>, vector<8x128xf32>,
      %cst_19 = arith.constant 0.000000e+00 : f32
      %22 = vector.broadcast %cst_19 : f32 to vector<8x8xf32>
      %c0_20 = arith.constant 0 : index
      %c0_21 = arith.constant 0 : index
      %23 = vector.load %arg10[%c0_20, %c0_21] : memref<8x8xf32, #tpu.memory_space<vmem>>, vector<8x8xf32>
      tpu.vector_store %arg10[%c0_20, %c0_21], %22 {strides = array<i32>} : memref<8x8xf32, #tpu.memory_space<vmem>>, vector<8x8xf32>,
    } else {
    }
    %c0 = arith.constant 0 : index
    %c0_1 = arith.constant 0 : index
    %3 = vector.load %arg3[%c0, %c0_1] : memref<8x128xf32, #tpu.memory_space<vmem>>, vector<8x128xf32>
    %c0_2 = arith.constant 0 : index
    %c0_3 = arith.constant 0 : index
    %4 = vector.load %arg9[%c0_2, %c0_3] : memref<8x128xf32, #tpu.memory_space<vmem>>, vector<8x128xf32>
    %c0_4 = arith.constant 0 : index
    %c0_5 = arith.constant 0 : index
    %5 = vector.load %arg4[%c0_4, %c0_5] : memref<128x128xf32, #tpu.memory_space<vmem>>, vector<128x128xf32>
    %cst = arith.constant dense<0.000000e+00> : vector<8x128xf32>
    %6 = tpu.matmul %3, %5, %cst {dimension_numbers = #tpu.dot_dimension_numbers<[1], [0], [0], [1], [0, 0, 1, 1], [], []>} : vector<8x128xf32>, vector<128x128xf32>, vector<8x128xf32> -> vector<8x128xf32>
    %7 = arith.addf %4, %6 : vector<8x128xf32>
    %c0_6 = arith.constant 0 : index
    %c0_7 = arith.constant 0 : index
    %8 = vector.load %arg9[%c0_6, %c0_7] : memref<8x128xf32, #tpu.memory_space<vmem>>, vector<8x128xf32>
    tpu.vector_store %arg9[%c0_6, %c0_7], %7 {strides = array<i32>} : memref<8x128xf32, #tpu.memory_space<vmem>>, vector<8x128xf32>,
    %c128_i32 = arith.constant 128 : i32
    %9 = arith.muli %arg2, %c128_i32 : i32
    %10 = tpu.assume_multiple %9, 128 : i32
    %c0_8 = arith.constant 0 : index
    %c0_9 = arith.constant 0 : index
    %11 = vector.load %arg10[%c0_8, %c0_9] : memref<8x8xf32, #tpu.memory_space<vmem>>, vector<8x8xf32>
    %12 = arith.index_cast %10 : i32 to index
    %c0_10 = arith.constant 0 : index
    %13 = vector.load %arg6[%12, %c0_10] : memref<128x8xf32, #tpu.memory_space<vmem>>, vector<128x8xf32>
    %cst_11 = arith.constant dense<0.000000e+00> : vector<8x8xf32>
    %14 = tpu.matmul %3, %13, %cst_11 {dimension_numbers = #tpu.dot_dimension_numbers<[1], [0], [0], [1], [0, 0, 1, 1], [], []>} : vector<8x128xf32>, vector<128x8xf32>, vector<8x8xf32> -> vector<8x8xf32>
    %15 = arith.addf %11, %14 : vector<8x8xf32>
    %c0_12 = arith.constant 0 : index
    %c0_13 = arith.constant 0 : index
    %16 = vector.load %arg10[%c0_12, %c0_13] : memref<8x8xf32, #tpu.memory_space<vmem>>, vector<8x8xf32>
    tpu.vector_store %arg10[%c0_12, %c0_13], %15 {strides = array<i32>} : memref<8x8xf32, #tpu.memory_space<vmem>>, vector<8x8xf32>,
    %c0_i32_14 = arith.constant 0 : i32
    %17 = arith.cmpi eq, %arg2, %c0_i32_14 : i32
    %18 = arith.extui %17 : i1 to i32
    %c0_i32_15 = arith.constant 0 : i32
    %19 = arith.cmpi ne, %18, %c0_i32_15 : i32
    scf.if %19 {
      %c0_16 = arith.constant 0 : index
      %c0_17 = arith.constant 0 : index
      %20 = vector.load %arg10[%c0_16, %c0_17] : memref<8x8xf32, #tpu.memory_space<vmem>>, vector<8x8xf32>
      %c0_18 = arith.constant 0 : index
      %c0_19 = arith.constant 0 : index
      %21 = vector.load %arg7[%c0_18, %c0_19] : memref<8x128xf32, #tpu.memory_space<vmem>>, vector<8x128xf32>
      %cst_20 = arith.constant dense<0.000000e+00> : vector<8x128xf32>
      %22 = tpu.matmul %20, %21, %cst_20 {dimension_numbers = #tpu.dot_dimension_numbers<[1], [0], [0], [1], [0, 0, 1, 1], [], []>} : vector<8x8xf32>, vector<8x128xf32>, vector<8x128xf32> -> vector<8x128xf32>
      %c0_21 = arith.constant 0 : index
      %c0_22 = arith.constant 0 : index
      %23 = vector.load %arg9[%c0_21, %c0_22] : memref<8x128xf32, #tpu.memory_space<vmem>>, vector<8x128xf32>
      %24 = arith.addf %23, %22 : vector<8x128xf32>
      %c0_23 = arith.constant 0 : index
      %c0_24 = arith.constant 0 : index
      %25 = vector.load %arg5[%c0_23, %c0_24] : memref<1x128xf32, #tpu.memory_space<vmem>>, vector<1x128xf32>
      %26 = vector.broadcast %25 : vector<1x128xf32> to vector<8x128xf32>
      %27 = arith.addf %24, %26 : vector<8x128xf32>
      %c0_25 = arith.constant 0 : index
      %c0_26 = arith.constant 0 : index
      %28 = vector.load %arg8[%c0_25, %c0_26] : memref<8x128xf32, #tpu.memory_space<vmem>>, vector<8x128xf32>
      tpu.vector_store %arg8[%c0_25, %c0_26], %27 {strides = array<i32>} : memref<8x128xf32, #tpu.memory_space<vmem>>, vector<8x128xf32>,
    } else {
    }
    return
  }
  func.func @transform_0(%arg0: i32, %arg1: i32, %arg2: i32) -> (i32, i32) {
    %c0_i32 = arith.constant 0 : i32
    return %arg0, %arg2 : i32, i32
  }
  func.func @transform_1(%arg0: i32, %arg1: i32, %arg2: i32) -> (i32, i32) {
    %c0_i32 = arith.constant 0 : i32
    return %arg2, %arg1 : i32, i32
  }
  func.func @transform_2(%arg0: i32, %arg1: i32, %arg2: i32) -> (i32, i32) {
    %c0_i32 = arith.constant 0 : i32
    %c0_i32_0 = arith.constant 0 : i32
    return %c0_i32, %arg1 : i32, i32
  }
  func.func @transform_3(%arg0: i32, %arg1: i32, %arg2: i32) -> (i32, i32) {
    %c0_i32 = arith.constant 0 : i32
    %c0_i32_0 = arith.constant 0 : i32
    %c0_i32_1 = arith.constant 0 : i32
    return %c0_i32, %c0_i32_0 : i32, i32
  }
  func.func @transform_4(%arg0: i32, %arg1: i32, %arg2: i32) -> (i32, i32) {
    %c0_i32 = arith.constant 0 : i32
    %c0_i32_0 = arith.constant 0 : i32
    return %c0_i32, %arg1 : i32, i32
  }
  func.func @transform_5(%arg0: i32, %arg1: i32, %arg2: i32) -> (i32, i32) {
    %c0_i32 = arith.constant 0 : i32
    return %arg0, %arg1 : i32, i32
  }
}

</mosaic_0001>

<llo_original>
// kernel: tpu_custom_call.1
$region0: #{tpu_custom_call.1}
  #allocation0 [shape = 'u32[]', space=smem, size = 0x4, offset = 0x4, fixed_abs, tag = 'smem constant byte address 0x4 - core index']
  #allocation1 [shape = 'u32[144,128]{1,0:T(1,128)}', space=vmem, size = 0x12000, scoped, tag = 'internal scratch']
  #allocation2 [shape = 'f32[8,128]{1,0:T(8,128)}', space=vmem, size = 0x1000, scoped, tag = 'scratch operand']
  #allocation3 [shape = 'f32[8,8]{1,0:T(8,128)}', space=vmem, size = 0x1000, scoped, tag = 'scratch operand']
  %s0 = inlined_call_operand.vmem [shape: f32[8,128], index: 0, kind: input, shape index: {}]
  %s1 = inlined_call_operand.vmem [shape: f32[128,128], index: 1, kind: input, shape index: {}]
  %s2 = inlined_call_operand.vmem [shape: f32[1,128], index: 2, kind: input, shape index: {}]
  %s3 = inlined_call_operand.vmem [shape: f32[128,8], index: 3, kind: input, shape index: {}]
  %s4 = inlined_call_operand.hbm [shape: f32[8,128], index: 4, kind: input, shape index: {}]
  %s5 = inlined_call_operand.hbm [shape: f32[8,128], index: 5, kind: output, shape index: {}]
  %s6 = sld [smem:[#allocation0]]
  $region42: #{tpu_custom_call.1} parent=0
    _
  %s8 = ssub.s32 1, %s6
  %s9 = scalar_select 0, %s8, %s6
  $region1: #{tpu_custom_call.1} parent=0
    #allocation4 [shape = 'u8[4096]{0}', space=vmem, size = 0x1000, scoped, tag = 'input window, operand 4, single buffered']
    #allocation5 [shape = 's32[1]{0}', space=sflag, size = 0x4, scoped, tag = 'scoped memory for tpu_custom_call.1']
    #allocation6 [shape = 's32[1]{0}', space=sflag, size = 0x4, scoped, tag = 'scoped memory for tpu_custom_call.1']
    #allocation7 [shape = 'u8[4096]{0}', space=vmem, size = 0x1000, scoped, tag = 'output window, operand 0, single buffered']
    %10 = vsyncpa [#allocation5], 0
    %11 = vsyncpa [#allocation6], 0
    // Predicated region
    $region2: #{tpu_custom_call.1} parent=1 // pred_check
      _
    $region3: #{tpu_custom_call.1} parent=1 // pred_check_branch
      %13 = sbr.rel (0) target = $region5
    $region4: #{tpu_custom_call.1} parent=1 // pred_region
      _
    $region5: #{tpu_custom_call.1} parent=1 // pred_fallthru
      _
    // Predicated region
    $region6: #{tpu_custom_call.1} parent=1 // pred_check
      _
    $region7: #{tpu_custom_call.1} parent=1 // pred_check_branch
      %15 = sbr.rel (0) target = $region9
    $region8: #{tpu_custom_call.1} parent=1 // pred_region
      _
    $region9: #{tpu_custom_call.1} parent=1 // pred_fallthru
      _
    // Predicated region
    $region10: #{tpu_custom_call.1} parent=1 // pred_check
      _
    $region11: #{tpu_custom_call.1} parent=1 // pred_check_branch
      %17 = sbr.rel (0) target = $region13
    $region12: #{tpu_custom_call.1} parent=1 // pred_region
      _
    $region13: #{tpu_custom_call.1} parent=1 // pred_fallthru
      _
    // Predicated region
    $region14: #{tpu_custom_call.1} parent=1 // pred_check
      _
    $region15: #{tpu_custom_call.1} parent=1 // pred_check_branch
      %19 = sbr.rel (0) target = $region17
    $region16: #{tpu_custom_call.1} parent=1 // pred_region
      _
    $region17: #{tpu_custom_call.1} parent=1 // pred_fallthru
      _
    // Predicated region
    $region18: #{tpu_custom_call.1} parent=1 // pred_check
      _
    $region19: #{tpu_custom_call.1} parent=1 // pred_check_branch
      %21 = sbr.rel (0) target = $region21
    $region20: #{tpu_custom_call.1} parent=1 // pred_region
      %s23 = ssub.s32 128, 128
      %24 = vsyncadd [#allocation5], %s23
      %s26 = sshll.u32 [#allocation4], 4
      %s27 = int_to_ptr.vmem [resolvable:$true] %s26
      %29 = dma.hbm_to_vmem [thread:$0]  %s4, 128, %s27, [#allocation5]
    $region21: #{tpu_custom_call.1} parent=1 // pred_fallthru
      _
    // Predicated region
    $region22: #{tpu_custom_call.1} parent=1 // pred_check
      _
    $region23: #{tpu_custom_call.1} parent=1 // pred_check_branch
      %31 = sbr.rel (0) target = $region25
    $region24: #{tpu_custom_call.1} parent=1 // pred_region
      %32 = dma.done [#allocation5], 128
    $region25: #{tpu_custom_call.1} parent=1 // pred_fallthru
      _
    %p33 = scmp.eq.s32.totalorder 0, 0
    // Predicated region
    $region26: #{tpu_custom_call.1} parent=1 // pred_check
      %p34 = pneg %p33
    $region27: #{tpu_custom_call.1} parent=1 // pred_check_branch
      %36 = sbr.rel (%p34) target = $region29
    $region28: #{tpu_custom_call.1} parent=1 // pred_region
      %37 = vst [vmem:[#allocation2] sm:$0xff] 0.0
      %vm38 = vcmask 64512
      %39 = vst.msk [vmem:[#allocation3] sm:$0xff] %vm38, 0.0
    $region29: #{tpu_custom_call.1} parent=1 // pred_fallthru
      _
    %v40 = vld [vmem:[%s0] sm:$0xff]
    %v41 = vld [vmem:[#allocation2] sm:$0xff]
    %v42 = vld [vmem:[%s1] sm:$0xff]
    %v43 = vld [vmem:[%s1 + $0x8] sm:$0xff]
    %v44 = vld [vmem:[%s1 + $0x10] sm:$0xff]
    %v45 = vld [vmem:[%s1 + $0x18] sm:$0xff]
    %v46 = vld [vmem:[%s1 + $0x20] sm:$0xff]
    %v47 = vld [vmem:[%s1 + $0x28] sm:$0xff]
    %v48 = vld [vmem:[%s1 + $0x30] sm:$0xff]
    %v49 = vld [vmem:[%s1 + $0x38] sm:$0xff]
    %v50 = vld [vmem:[%s1 + $0x40] sm:$0xff]
    %v51 = vld [vmem:[%s1 + $0x48] sm:$0xff]
    %v52 = vld [vmem:[%s1 + $0x50] sm:$0xff]
    %v53 = vld [vmem:[%s1 + $0x58] sm:$0xff]
    %v54 = vld [vmem:[%s1 + $0x60] sm:$0xff]
    %v55 = vld [vmem:[%s1 + $0x68] sm:$0xff]
    %v56 = vld [vmem:[%s1 + $0x70] sm:$0xff]
    %v57 = vld [vmem:[%s1 + $0x78] sm:$0xff]
    %58 = vmatprep.subr.mxu0 0.0
    %59 = vmatpush1.msra.mxu0 %v42
    %60 = vmatprep.subr.mxu0 0.0
    %61 = vmatpush1.msra.mxu0 %v43
    %62 = vmatprep.subr.mxu0 0.0
    %63 = vmatpush1.msra.mxu0 %v44
    %64 = vmatprep.subr.mxu0 0.0
    %65 = vmatpush1.msra.mxu0 %v45
    %66 = vmatprep.subr.mxu0 0.0
    %67 = vmatpush1.msra.mxu0 %v46
    %68 = vmatprep.subr.mxu0 0.0
    %69 = vmatpush1.msra.mxu0 %v47
    %70 = vmatprep.subr.mxu0 0.0
    %71 = vmatpush1.msra.mxu0 %v48
    %72 = vmatprep.subr.mxu0 0.0
    %73 = vmatpush1.msra.mxu0 %v49
    %74 = vmatprep.subr.mxu0 0.0
    %75 = vmatpush1.msra.mxu0 %v50
    %76 = vmatprep.subr.mxu0 0.0
    %77 = vmatpush1.msra.mxu0 %v51
    %78 = vmatprep.subr.mxu0 0.0
    %79 = vmatpush1.msra.mxu0 %v52
    %80 = vmatprep.subr.mxu0 0.0
    %81 = vmatpush1.msra.mxu0 %v53
    %82 = vmatprep.subr.mxu0 0.0
    %83 = vmatpush1.msra.mxu0 %v54
    %84 = vmatprep.subr.mxu0 0.0
    %85 = vmatpush1.msra.mxu0 %v55
    %86 = vmatprep.subr.mxu0 0.0
    %87 = vmatpush1.msra.mxu0 %v56
    %88 = vmatprep.subr.mxu0 0.0
    %89 = vmatpush1.msra.mxu0 %v57
    %90 = vmatprep.subr.mxu0 0.0
    %91 = vmatpush1.msra.mxu0 0.0
    %92 = vmatprep.subr.mxu0 0.0
    %93 = vmatpush1.msra.mxu0 0.0
    %94 = vmatprep.subr.mxu0 0.0
    %95 = vmatpush1.msra.mxu0 0.0
    %96 = vmatprep.subr.mxu0 0.0
    %97 = vmatpush1.msra.mxu0 0.0
    %98 = vmatprep.subr.mxu0 0.0
    %99 = vmatpush1.msra.mxu0 0.0
    %100 = vmatprep.subr.mxu0 0.0
    %101 = vmatpush1.msra.mxu0 0.0
    %102 = vmatprep.subr.mxu0 0.0
    %103 = vmatpush1.msra.mxu0 0.0
    %104 = vmatprep.subr.mxu0 0.0
    %105 = vmatpush1.msra.mxu0 0.0
    %106 = vmatprep.subr.mxu0 0.0
    %107 = vmatpush1.msra.mxu0 0.0
    %108 = vmatprep.subr.mxu0 0.0
    %109 = vmatpush1.msra.mxu0 0.0
    %110 = vmatprep.subr.mxu0 0.0
    %111 = vmatpush1.msra.mxu0 0.0
    %112 = vmatprep.subr.mxu0 0.0
    %113 = vmatpush1.msra.mxu0 0.0
    %114 = vmatprep.subr.mxu0 0.0
    %115 = vmatpush1.msra.mxu0 0.0
    %116 = vmatprep.subr.mxu0 0.0
    %117 = vmatpush1.msra.mxu0 0.0
    %118 = vmatprep.subr.mxu0 0.0
    %119 = vmatpush1.msra.mxu0 0.0
    %120 = vmatprep.subr.mxu0 0.0
    %121 = vmatpush1.msra.mxu0 0.0
    %122 = vmatprep.mubr.f32.mxu0 0.0
    %123 = vmatmul.mubr.f32.gmra.mrb[0].mxu0 %v40
    %v124 = vpop.f32.mrb[0].mxu0
    %v125 = vadd.f32 0.0, %v124
    %v126 = vpop.f32.mrb[0].mxu0
    %127 = vdwg.mxu0
    %v128 = vadd.f32 %v41, %v125
    %129 = vst [vmem:[#allocation2] sm:$0xff] %v128
    %s130 = smul.u32 0, 128
    %v131 = vld [vmem:[#allocation3] sm:$0xff]
    %s132 = scalar_lea.vmem %s3, %s130
    %v133 = vld [vmem:[%s132] sm:$0xff]
    %v134 = vld [vmem:[%s132 + $0x8] sm:$0xff]
    %v135 = vld [vmem:[%s132 + $0x10] sm:$0xff]
    %v136 = vld [vmem:[%s132 + $0x18] sm:$0xff]
    %v137 = vld [vmem:[%s132 + $0x20] sm:$0xff]
    %v138 = vld [vmem:[%s132 + $0x28] sm:$0xff]
    %v139 = vld [vmem:[%s132 + $0x30] sm:$0xff]
    %v140 = vld [vmem:[%s132 + $0x38] sm:$0xff]
    %v141 = vld [vmem:[%s132 + $0x40] sm:$0xff]
    %v142 = vld [vmem:[%s132 + $0x48] sm:$0xff]
    %v143 = vld [vmem:[%s132 + $0x50] sm:$0xff]
    %v144 = vld [vmem:[%s132 + $0x58] sm:$0xff]
    %v145 = vld [vmem:[%s132 + $0x60] sm:$0xff]
    %v146 = vld [vmem:[%s132 + $0x68] sm:$0xff]
    %v147 = vld [vmem:[%s132 + $0x70] sm:$0xff]
    %v148 = vld [vmem:[%s132 + $0x78] sm:$0xff]
    %149 = vmatprep.subr.mxu0 0.0
    %150 = vmatpush1.msra.mxu0 %v133
    %151 = vmatprep.subr.mxu0 0.0
    %152 = vmatpush1.msra.mxu0 %v134
    %153 = vmatprep.subr.mxu0 0.0
    %154 = vmatpush1.msra.mxu0 %v135
    %155 = vmatprep.subr.mxu0 0.0
    %156 = vmatpush1.msra.mxu0 %v136
    %157 = vmatprep.subr.mxu0 0.0
    %158 = vmatpush1.msra.mxu0 %v137
    %159 = vmatprep.subr.mxu0 0.0
    %160 = vmatpush1.msra.mxu0 %v138
    %161 = vmatprep.subr.mxu0 0.0
    %162 = vmatpush1.msra.mxu0 %v139
    %163 = vmatprep.subr.mxu0 0.0
    %164 = vmatpush1.msra.mxu0 %v140
    %165 = vmatprep.subr.mxu0 0.0
    %166 = vmatpush1.msra.mxu0 %v141
    %167 = vmatprep.subr.mxu0 0.0
    %168 = vmatpush1.msra.mxu0 %v142
    %169 = vmatprep.subr.mxu0 0.0
    %170 = vmatpush1.msra.mxu0 %v143
    %171 = vmatprep.subr.mxu0 0.0
    %172 = vmatpush1.msra.mxu0 %v144
    %173 = vmatprep.subr.mxu0 0.0
    %174 = vmatpush1.msra.mxu0 %v145
    %175 = vmatprep.subr.mxu0 0.0
    %176 = vmatpush1.msra.mxu0 %v146
    %177 = vmatprep.subr.mxu0 0.0
    %178 = vmatpush1.msra.mxu0 %v147
    %179 = vmatprep.subr.mxu0 0.0
    %180 = vmatpush1.msra.mxu0 %v148
    %181 = vmatprep.subr.mxu0 0.0
    %182 = vmatpush1.msra.mxu0 0.0
    %183 = vmatprep.subr.mxu0 0.0
    %184 = vmatpush1.msra.mxu0 0.0
    %185 = vmatprep.subr.mxu0 0.0
    %186 = vmatpush1.msra.mxu0 0.0
    %187 = vmatprep.subr.mxu0 0.0
    %188 = vmatpush1.msra.mxu0 0.0
    %189 = vmatprep.subr.mxu0 0.0
    %190 = vmatpush1.msra.mxu0 0.0
    %191 = vmatprep.subr.mxu0 0.0
    %192 = vmatpush1.msra.mxu0 0.0
    %193 = vmatprep.subr.mxu0 0.0
    %194 = vmatpush1.msra.mxu0 0.0
    %195 = vmatprep.subr.mxu0 0.0
    %196 = vmatpush1.msra.mxu0 0.0
    %197 = vmatprep.subr.mxu0 0.0
    %198 = vmatpush1.msra.mxu0 0.0
    %199 = vmatprep.subr.mxu0 0.0
    %200 = vmatpush1.msra.mxu0 0.0
    %201 = vmatprep.subr.mxu0 0.0
    %202 = vmatpush1.msra.mxu0 0.0
    %203 = vmatprep.subr.mxu0 0.0
    %204 = vmatpush1.msra.mxu0 0.0
    %205 = vmatprep.subr.mxu0 0.0
    %206 = vmatpush1.msra.mxu0 0.0
    %207 = vmatprep.subr.mxu0 0.0
    %208 = vmatpush1.msra.mxu0 0.0
    %209 = vmatprep.subr.mxu0 0.0
    %210 = vmatpush1.msra.mxu0 0.0
    %211 = vmatprep.subr.mxu0 0.0
    %212 = vmatpush1.msra.mxu0 0.0
    %213 = vmatprep.mubr.f32.mxu0 0.0
    %214 = vmatmul.mubr.f32.gmra.mrb[0].mxu0 %v40
    %v215 = vpop.f32.mrb[0].mxu0
    %v216 = vadd.f32 0.0, %v215
    %v217 = vpop.f32.mrb[0].mxu0
    %218 = vdwg.mxu0
    %v219 = vadd.f32 %v131, %v216
    %vm220 = vcmask 64512
    %221 = vst.msk [vmem:[#allocation3] sm:$0xff] %vm220, %v219
    // Predicated region
    $region30: #{tpu_custom_call.1} parent=1 // pred_check
      %p222 = pneg %p33
    $region31: #{tpu_custom_call.1} parent=1 // pred_check_branch
      %224 = sbr.rel (%p222) target = $region33
    $region32: #{tpu_custom_call.1} parent=1 // pred_region
      %v225 = vld [vmem:[#allocation3] sm:$0xff]
      %v226 = vld [vmem:[#allocation4] sm:$0xff]
      %v228 = vsel %vm220, %v225, 0
      %230 = vmatprep.subr.mxu0 0.0
      %231 = vmatpush1.msra.mxu0 %v226
      %232 = vmatprep.subr.mxu0 0.0
      %233 = vmatpush1.msra.mxu0 0.0
      %234 = vmatprep.subr.mxu0 0.0
      %235 = vmatpush1.msra.mxu0 0.0
      %236 = vmatprep.subr.mxu0 0.0
      %237 = vmatpush1.msra.mxu0 0.0
      %238 = vmatprep.subr.mxu0 0.0
      %239 = vmatpush1.msra.mxu0 0.0
      %240 = vmatprep.subr.mxu0 0.0
      %241 = vmatpush1.msra.mxu0 0.0
      %242 = vmatprep.subr.mxu0 0.0
      %243 = vmatpush1.msra.mxu0 0.0
      %244 = vmatprep.subr.mxu0 0.0
      %245 = vmatpush1.msra.mxu0 0.0
      %246 = vmatprep.subr.mxu0 0.0
      %247 = vmatpush1.msra.mxu0 0.0
      %248 = vmatprep.subr.mxu0 0.0
      %249 = vmatpush1.msra.mxu0 0.0
      %250 = vmatprep.subr.mxu0 0.0
      %251 = vmatpush1.msra.mxu0 0.0
      %252 = vmatprep.subr.mxu0 0.0
      %253 = vmatpush1.msra.mxu0 0.0
      %254 = vmatprep.subr.mxu0 0.0
      %255 = vmatpush1.msra.mxu0 0.0
      %256 = vmatprep.subr.mxu0 0.0
      %257 = vmatpush1.msra.mxu0 0.0
      %258 = vmatprep.subr.mxu0 0.0
      %259 = vmatpush1.msra.mxu0 0.0
      %260 = vmatprep.subr.mxu0 0.0
      %261 = vmatpush1.msra.mxu0 0.0
      %262 = vmatprep.subr.mxu0 0.0
      %263 = vmatpush1.msra.mxu0 0.0
      %264 = vmatprep.subr.mxu0 0.0
      %265 = vmatpush1.msra.mxu0 0.0
      %266 = vmatprep.subr.mxu0 0.0
      %267 = vmatpush1.msra.mxu0 0.0
      %268 = vmatprep.subr.mxu0 0.0
      %269 = vmatpush1.msra.mxu0 0.0
      %270 = vmatprep.subr.mxu0 0.0
      %271 = vmatpush1.msra.mxu0 0.0
      %272 = vmatprep.subr.mxu0 0.0
      %273 = vmatpush1.msra.mxu0 0.0
      %274 = vmatprep.subr.mxu0 0.0
      %275 = vmatpush1.msra.mxu0 0.0
      %276 = vmatprep.subr.mxu0 0.0
      %277 = vmatpush1.msra.mxu0 0.0
      %278 = vmatprep.subr.mxu0 0.0
      %279 = vmatpush1.msra.mxu0 0.0
      %280 = vmatprep.subr.mxu0 0.0
      %281 = vmatpush1.msra.mxu0 0.0
      %282 = vmatprep.subr.mxu0 0.0
      %283 = vmatpush1.msra.mxu0 0.0
      %284 = vmatprep.subr.mxu0 0.0
      %285 = vmatpush1.msra.mxu0 0.0
      %286 = vmatprep.subr.mxu0 0.0
      %287 = vmatpush1.msra.mxu0 0.0
      %288 = vmatprep.subr.mxu0 0.0
      %289 = vmatpush1.msra.mxu0 0.0
      %290 = vmatprep.subr.mxu0 0.0
      %291 = vmatpush1.msra.mxu0 0.0
      %292 = vmatprep.subr.mxu0 0.0
      %293 = vmatpush1.msra.mxu0 0.0
      %294 = vmatprep.mubr.f32.mxu0 0.0
      %295 = vmatmul.mubr.f32.gmra.mrb[0].mxu0 %v228
      %v296 = vpop.f32.mrb[0].mxu0
      %v297 = vadd.f32 0.0, %v296
      %v298 = vpop.f32.mrb[0].mxu0
      %299 = vdwg.mxu0
      %v300 = vld [vmem:[#allocation2] sm:$0xff]
      %v301 = vadd.f32 %v300, %v297
      %v302 = vld [vmem:[%s2] sm:$0x1]
      %v304 = vlaneseq
      %v305 = vshrl.u32 %v304, 7
      %v306 = vsub.s32 0, %v305
      %v307 = vrot.slane %v302, %v306
      %v309 = vadd.f32 %v301, %v307
      %310 = vst [vmem:[#allocation7] sm:$0xff] %v309
    $region33: #{tpu_custom_call.1} parent=1 // pred_fallthru
      _
    // Predicated region
    $region34: #{tpu_custom_call.1} parent=1 // pred_check
      _
    $region35: #{tpu_custom_call.1} parent=1 // pred_check_branch
      %312 = sbr.rel (0) target = $region37
    $region36: #{tpu_custom_call.1} parent=1 // pred_region
      %s314 = ssub.s32 128, 128
      %315 = vsyncadd [#allocation6], %s314
      %s317 = sshll.u32 [#allocation7], 4
      %s318 = int_to_ptr.vmem [resolvable:$true] %s317
      %320 = dma.vmem_to_hbm [thread:$0]  %s318, 128, %s5, [#allocation6]
    $region37: #{tpu_custom_call.1} parent=1 // pred_fallthru
      _
    // Predicated region
    $region38: #{tpu_custom_call.1} parent=1 // pred_check
      _
    $region39: #{tpu_custom_call.1} parent=1 // pred_check_branch
      %322 = sbr.rel (0) target = $region41
    $region40: #{tpu_custom_call.1} parent=1 // pred_region
      %323 = dma.done [#allocation6], 128
    $region41: #{tpu_custom_call.1} parent=1 // pred_fallthru
      _
    %324 = vsyncpa [#allocation5], 1
    %325 = vsyncpa [#allocation6], 1

</llo_original>
